<compile_context>
chip_gen: v6e
topology: v6e:2x2x1
jax: 0.10.0
libtpu: 0.0.40
codegen_flags: <defaults>
</compile_context>

<pallas_src>
import jax
import jax.numpy as jnp
from jax import lax
from jax.experimental import pallas as pl
from jax.experimental.pallas import tpu as pltpu

_LANE = 128        # vreg lane width
_CHUNK_ROWS = 8    # sublane rows processed per inner-loop step (= 1 f32 vreg)


# ---------------------------------------------------------------------------
# Specialized path: nInput == 1 and nOutput == 1 (scalar regression).
# Samples are packed densely along the lane axis: x block is (tile_rows, 128).
# out[b] = b2 + sum_j w2[j] * relu(x[b] * w1[j] + b1[j])   -- pure VPU work.
# ---------------------------------------------------------------------------
def _mlp_scalar_kernel(w1_ref, b1_ref, w2_ref, b2_ref, x_ref, o_ref):
    # w1/b1/w2: SMEM f32[nHidden]; b2: SMEM f32[1]; x/o: VMEM (tile_rows, 128).
    n_hidden = w1_ref.shape[0]
    tile_rows = x_ref.shape[0]

    def compute_chunk(xc):
        # Fold b2 into the accumulator init (saves one VALU add + a zeros fill).
        acc = jnp.full_like(xc, b2_ref[0])
        # Static unroll over the small hidden dim: 3 VPU ops per term on one
        # lane-dense chunk; scalars come cheaply from SMEM.
        for j in range(n_hidden):
            h = jnp.maximum(xc * w1_ref[j] + b1_ref[j], 0.0)
            acc = acc + h * w2_ref[j]
        return acc

    if tile_rows <= _CHUNK_ROWS or (tile_rows % _CHUNK_ROWS) != 0:
        # Tiny tile: do it in one shot (register pressure is already low).
        o_ref[...] = compute_chunk(x_ref[...])
    else:
        n_chunks = tile_rows // _CHUNK_ROWS

        # Chunked inner loop keeps only ~3 vregs live across the hidden unroll
        # (x chunk, acc, temp) -> no spill traffic on the vld/vst slots.
        def body(r, carry):
            off = pl.multiple_of(r * _CHUNK_ROWS, _CHUNK_ROWS)
            xc = x_ref[pl.ds(off, _CHUNK_ROWS), :]
            o_ref[pl.ds(off, _CHUNK_ROWS), :] = compute_chunk(xc)
            return carry

        lax.fori_loop(0, n_chunks, body, 0)


def _mlp_scalar_lane_dense(x, w1, b1, w2, b2):
    B = x.shape[0]
    rows = pl.cdiv(B, _LANE)                      # 128-sample lane rows needed

    if rows <= 8:
        # Small problem: a single tile covering everything (block == full array).
        n_tiles = 1
        tile_rows = max(rows, 1)
    else:
        # Target ~512 lane-rows (~256 KiB f32) per grid step to amortize the
        # ~0.35 us per-step overhead; keep the grid >= 2 and even so the
        # "parallel" batch axis can be split across v7x's 2 TensorCores.
        target_rows = 512
        n_tiles = max(2, pl.cdiv(rows, target_rows))
        if n_tiles % 2:
            n_tiles += 1
        tile_rows = pl.cdiv(rows, n_tiles)
        tile_rows = pl.cdiv(tile_rows, _CHUNK_ROWS) * _CHUNK_ROWS  # sublane aligned

    rows_padded = n_tiles * tile_rows
    b_padded = rows_padded * _LANE

    # Pack the batch densely along the lane axis: (rows_padded, 128).
    # When B already fills the packed layout exactly this is a reshape only
    # (no extra HBM copy / pad op before the kernel).
    x_flat = x.reshape(-1).astype(jnp.float32)
    if b_padded != B:
        x_flat = jnp.pad(x_flat, (0, b_padded - B))
    x_packed = x_flat.reshape(rows_padded, _LANE)

    # VMEM budget: in + out tiles, double-buffered, with 2x headroom.
    tile_bytes = tile_rows * _LANE * 4
    vmem_bytes = int(min(max(2 * 2 * 2 * tile_bytes, 8 << 20), 48 << 20))

    out_packed = pl.pallas_call(
        _mlp_scalar_kernel,
        out_shape=jax.ShapeDtypeStruct((rows_padded, _LANE), jnp.float32),
        grid_spec=pl.GridSpec(
            grid=(n_tiles,),
            in_specs=[
                # Tiny params live in SMEM: no per-step DMA descriptors,
                # resident for the whole grid, cheap scalar-indexed reads.
                pl.BlockSpec(memory_space=pltpu.MemorySpace.SMEM),  # w1  (nHidden,)
                pl.BlockSpec(memory_space=pltpu.MemorySpace.SMEM),  # b1  (nHidden,)
                pl.BlockSpec(memory_space=pltpu.MemorySpace.SMEM),  # w2  (nHidden,)
                pl.BlockSpec(memory_space=pltpu.MemorySpace.SMEM),  # b2  (1,)
                pl.BlockSpec((tile_rows, _LANE), lambda i: (i, 0)),  # x tile
            ],
            out_specs=pl.BlockSpec((tile_rows, _LANE), lambda i: (i, 0)),
        ),
        compiler_params=pltpu.CompilerParams(
            # "parallel" so the runtime may shard batch tiles across v7x's 2 TCs.
            dimension_semantics=("parallel",),
            vmem_limit_bytes=vmem_bytes,
        ),
    )(
        w1.reshape(-1).astype(jnp.float32),
        b1.reshape(-1).astype(jnp.float32),
        w2.reshape(-1).astype(jnp.float32),
        b2.reshape(-1).astype(jnp.float32),
        x_packed,
    )
    return out_packed.reshape(-1)[:B].reshape(B, 1)


# ---------------------------------------------------------------------------
# General path: arbitrary (nInput, nHidden, nOutput). Fused matmul+ReLU+matmul,
# tiled over the batch axis; weights/biases use a constant index_map so they
# stay resident in VMEM across all batch tiles. The output feature axis is
# zero-padded to a multiple of 128 so output stores are lane-dense (no vst.msk).
# ---------------------------------------------------------------------------
def _mlp_general_kernel(x_ref, w1_ref, b1_ref, w2_ref, b2_ref, o_ref):
    h = jnp.dot(x_ref[...], w1_ref[...], preferred_element_type=jnp.float32) + b1_ref[...]
    h = jnp.maximum(h, 0.0)
    out = jnp.dot(h, w2_ref[...], preferred_element_type=jnp.float32) + b2_ref[...]
    o_ref[...] = out.astype(o_ref.dtype)


def _mlp_general(x, w1, b1, w2, b2, tile_b=256):
    B, n_input = x.shape
    n_hidden = w1.shape[1]
    n_output = w2.shape[1]

    # Lane-dense output: pad n_output up to a multiple of 128 (zero columns are
    # discarded in the wrapper slice). One-time tiny host-side pad on weights.
    n_out_p = pl.cdiv(n_output, _LANE) * _LANE
    if n_out_p != n_output:
        w2p = jnp.pad(w2, ((0, 0), (0, n_out_p - n_output)))
        b2p = jnp.pad(b2, ((0, 0), (0, n_out_p - n_output)))
    else:
        w2p, b2p = w2, b2

    # Sublane-aligned batch tiling; tile_b=256 feeds the 256-wide MXU on v6e/v7x.
    b8 = pl.cdiv(B, 8) * 8
    tb = min(tile_b, b8)
    b_padded = pl.cdiv(b8, tb) * tb
    xp = jnp.pad(x, ((0, b_padded - B), (0, 0))) if b_padded != B else x
    n_tiles = b_padded // tb

    # VMEM budget from actual sizes: resident weights + double-buffered tiles +
    # intermediate h, with generous headroom; stays under v7x's 64 MiB physical.
    weights_bytes = (w1.size + b1.size + w2p.size + b2p.size) * 4
    tiles_bytes = 2 * 2 * (tb * n_input + tb * n_out_p) * 4
    scratch_bytes = 2 * tb * n_hidden * 4
    vmem_bytes = int(min(max(2 * (weights_bytes + tiles_bytes + scratch_bytes),
                             16 << 20), 48 << 20))

    out = pl.pallas_call(
        _mlp_general_kernel,
        out_shape=jax.ShapeDtypeStruct((b_padded, n_out_p), jnp.float32),
        grid_spec=pl.GridSpec(
            grid=(n_tiles,),
            in_specs=[
                pl.BlockSpec((tb, n_input), lambda i: (i, 0)),   # x: batch-tiled
                pl.BlockSpec(w1.shape, lambda i: (0, 0)),        # weights resident
                pl.BlockSpec(b1.shape, lambda i: (0, 0)),
                pl.BlockSpec(w2p.shape, lambda i: (0, 0)),
                pl.BlockSpec(b2p.shape, lambda i: (0, 0)),
            ],
            out_specs=pl.BlockSpec((tb, n_out_p), lambda i: (i, 0)),
        ),
        compiler_params=pltpu.CompilerParams(
            dimension_semantics=("parallel",),
            vmem_limit_bytes=vmem_bytes,
        ),
    )(
        xp.astype(jnp.float32),
        w1.astype(jnp.float32),
        b1.astype(jnp.float32),
        w2p.astype(jnp.float32),
        b2p.astype(jnp.float32),
    )
    return out[:B, :n_output]


# ---------------------------------------------------------------------------
# Public entry point: forward(x) = linear2(relu(linear1(x)))
#   x : (B, nInput); w1 : (nInput, nHidden); b1 : (1, nHidden)
#   w2 : (nHidden, nOutput); b2 : (1, nOutput)
# ---------------------------------------------------------------------------
def mlp_explicit_1(x, w1, b1, w2, b2):
    n_input = w1.shape[0]
    n_output = w2.shape[1]
    if n_input == 1 and n_output == 1:
        return _mlp_scalar_lane_dense(x, w1, b1, w2, b2)
    # TODO(synk): route other tiny-K/N shapes (nInput/nOutput < ~16) to a
    # generalized lane-dense VPU path instead of the padded MXU path.
    return _mlp_general(x, w1, b1, w2, b2)


def init_params(key, n_input, n_hidden, n_output):
    """PyTorch nn.Linear-style init: U[-1/sqrt(fan_in), 1/sqrt(fan_in)]."""
    k1, k2, k3, k4 = jax.random.split(key, 4)
    bound1 = 1.0 / jnp.sqrt(jnp.float32(n_input))
    bound2 = 1.0 / jnp.sqrt(jnp.float32(n_hidden))
    w1 = jax.random.uniform(k1, (n_input, n_hidden), jnp.float32, -bound1, bound1)
    b1 = jax.random.uniform(k2, (1, n_hidden), jnp.float32, -bound1, bound1)
    w2 = jax.random.uniform(k3, (n_hidden, n_output), jnp.float32, -bound2, bound2)
    b2 = jax.random.uniform(k4, (1, n_output), jnp.float32, -bound2, bound2)
    return w1, b1, w2, b2


if __name__ == "__main__":
    key = jax.random.PRNGKey(0)
    k_params, k_params2, k_x2 = jax.random.split(key, 3)

    # --- Case 1: the module's actual use (scalar-in / scalar-out regression) ----
    n_input, n_hidden, n_output = 1, 32, 1
    w1, b1, w2, b2 = init_params(k_params, n_input, n_hidden, n_output)

    # (a) Batch that packs exactly into lane rows: no pre-kernel pad, 2 parallel
    #     grid tiles (usable by both v7x TensorCores).
    batch_a = 2048
    xa = jnp.linspace(0.0, 1.0, batch_a, dtype=jnp.float32).reshape(batch_a, 1)
    out_a = mlp_explicit_1(xa, w1, b1, w2, b2)
    jax.block_until_ready(out_a)
    ref_a = jnp.maximum(xa @ w1 + b1, 0.0) @ w2 + b2
    assert out_a.shape == (batch_a, n_output)
    assert jnp.allclose(out_a, ref_a, atol=1e-5, rtol=1e-5)

    # (b) The spec's exact sample count (1000): ragged tail -> minimal pad path.
    batch_b = 1000
    xb = jnp.linspace(0.0, 1.0, batch_b, dtype=jnp.float32).reshape(batch_b, 1)
    out_b = mlp_explicit_1(xb, w1, b1, w2, b2)
    jax.block_until_ready(out_b)
    ref_b = jnp.maximum(xb @ w1 + b1, 0.0) @ w2 + b2
    assert out_b.shape == (batch_b, n_output)
    assert jnp.allclose(out_b, ref_b, atol=1e-5, rtol=1e-5)

    # --- Case 2: general shapes exercise the fused MXU path (lane-dense output) -
    n_input2, n_hidden2, n_output2 = 4, 32, 3
    batch2 = 64
    w1g, b1g, w2g, b2g = init_params(k_params2, n_input2, n_hidden2, n_output2)
    xg = jax.random.uniform(k_x2, (batch2, n_input2), jnp.float32)

    outg = mlp_explicit_1(xg, w1g, b1g, w2g, b2g)
    jax.block_until_ready(outg)
    refg = jnp.maximum(xg @ w1g + b1g, 0.0) @ w2g + b2g
    assert outg.shape == (batch2, n_output2)
    assert jnp.allclose(outg, refg, atol=1e-5, rtol=1e-5)

    print("KERNEL_OK")
</pallas_src>

<mosaic_0001>
module attributes {stable_mosaic.version = 11 : i64} {
  func.func @_mlp_scalar_kernel(%arg0: i32, %arg1: memref<32xf32, #tpu.memory_space<smem>>, %arg2: memref<32xf32, #tpu.memory_space<smem>>, %arg3: memref<32xf32, #tpu.memory_space<smem>>, %arg4: memref<1xf32, #tpu.memory_space<smem>>, %arg5: memref<8x128xf32, #tpu.memory_space<vmem>>, %arg6: memref<8x128xf32, #tpu.memory_space<vmem>>) attributes {dimension_semantics = [#tpu.dimension_semantics<parallel>], iteration_bounds = array<i64: 2>, scalar_prefetch = 0 : i64, scratch_operands = 0 : i64, tpu.core_type = #tpu.core_type<tc>, window_params = [{transform_indices = @transform_0, window_bounds = array<i64: 32>}, {transform_indices = @transform_1, window_bounds = array<i64: 32>}, {transform_indices = @transform_2, window_bounds = array<i64: 32>}, {transform_indices = @transform_3, window_bounds = array<i64: 1>}, {transform_indices = @transform_4, window_bounds = array<i64: 8, 128>}, {transform_indices = @transform_5, window_bounds = array<i64: 8, 128>}]} {
    %c0 = arith.constant 0 : index
    %c0_0 = arith.constant 0 : index
    %0 = vector.load %arg5[%c0, %c0_0] : memref<8x128xf32, #tpu.memory_space<vmem>>, vector<8x128xf32>
    %c0_1 = arith.constant 0 : index
    %1 = memref.load %arg4[%c0_1] : memref<1xf32, #tpu.memory_space<smem>>
    %2 = vector.broadcast %1 : f32 to vector<8x128xf32>
    %c0_2 = arith.constant 0 : index
    %3 = memref.load %arg1[%c0_2] : memref<32xf32, #tpu.memory_space<smem>>
    %4 = vector.broadcast %3 : f32 to vector<8x128xf32>
    %5 = arith.mulf %0, %4 : vector<8x128xf32>
    %c0_3 = arith.constant 0 : index
    %6 = memref.load %arg2[%c0_3] : memref<32xf32, #tpu.memory_space<smem>>
    %7 = vector.broadcast %6 : f32 to vector<8x128xf32>
    %8 = arith.addf %5, %7 : vector<8x128xf32>
    %cst = arith.constant 0.000000e+00 : f32
    %9 = vector.broadcast %cst : f32 to vector<8x128xf32>
    %10 = arith.maximumf %8, %9 : vector<8x128xf32>
    %c0_4 = arith.constant 0 : index
    %11 = memref.load %arg3[%c0_4] : memref<32xf32, #tpu.memory_space<smem>>
    %12 = vector.broadcast %11 : f32 to vector<8x128xf32>
    %13 = arith.mulf %10, %12 : vector<8x128xf32>
    %14 = arith.addf %2, %13 : vector<8x128xf32>
    %c1 = arith.constant 1 : index
    %15 = memref.load %arg1[%c1] : memref<32xf32, #tpu.memory_space<smem>>
    %16 = vector.broadcast %15 : f32 to vector<8x128xf32>
    %17 = arith.mulf %0, %16 : vector<8x128xf32>
    %c1_5 = arith.constant 1 : index
    %18 = memref.load %arg2[%c1_5] : memref<32xf32, #tpu.memory_space<smem>>
    %19 = vector.broadcast %18 : f32 to vector<8x128xf32>
    %20 = arith.addf %17, %19 : vector<8x128xf32>
    %cst_6 = arith.constant 0.000000e+00 : f32
    %21 = vector.broadcast %cst_6 : f32 to vector<8x128xf32>
    %22 = arith.maximumf %20, %21 : vector<8x128xf32>
    %c1_7 = arith.constant 1 : index
    %23 = memref.load %arg3[%c1_7] : memref<32xf32, #tpu.memory_space<smem>>
    %24 = vector.broadcast %23 : f32 to vector<8x128xf32>
    %25 = arith.mulf %22, %24 : vector<8x128xf32>
    %26 = arith.addf %14, %25 : vector<8x128xf32>
    %c2 = arith.constant 2 : index
    %27 = memref.load %arg1[%c2] : memref<32xf32, #tpu.memory_space<smem>>
    %28 = vector.broadcast %27 : f32 to vector<8x128xf32>
    %29 = arith.mulf %0, %28 : vector<8x128xf32>
    %c2_8 = arith.constant 2 : index
    %30 = memref.load %arg2[%c2_8] : memref<32xf32, #tpu.memory_space<smem>>
    %31 = vector.broadcast %30 : f32 to vector<8x128xf32>
    %32 = arith.addf %29, %31 : vector<8x128xf32>
    %cst_9 = arith.constant 0.000000e+00 : f32
    %33 = vector.broadcast %cst_9 : f32 to vector<8x128xf32>
    %34 = arith.maximumf %32, %33 : vector<8x128xf32>
    %c2_10 = arith.constant 2 : index
    %35 = memref.load %arg3[%c2_10] : memref<32xf32, #tpu.memory_space<smem>>
    %36 = vector.broadcast %35 : f32 to vector<8x128xf32>
    %37 = arith.mulf %34, %36 : vector<8x128xf32>
    %38 = arith.addf %26, %37 : vector<8x128xf32>
    %c3 = arith.constant 3 : index
    %39 = memref.load %arg1[%c3] : memref<32xf32, #tpu.memory_space<smem>>
    %40 = vector.broadcast %39 : f32 to vector<8x128xf32>
    %41 = arith.mulf %0, %40 : vector<8x128xf32>
    %c3_11 = arith.constant 3 : index
    %42 = memref.load %arg2[%c3_11] : memref<32xf32, #tpu.memory_space<smem>>
    %43 = vector.broadcast %42 : f32 to vector<8x128xf32>
    %44 = arith.addf %41, %43 : vector<8x128xf32>
    %cst_12 = arith.constant 0.000000e+00 : f32
    %45 = vector.broadcast %cst_12 : f32 to vector<8x128xf32>
    %46 = arith.maximumf %44, %45 : vector<8x128xf32>
    %c3_13 = arith.constant 3 : index
    %47 = memref.load %arg3[%c3_13] : memref<32xf32, #tpu.memory_space<smem>>
    %48 = vector.broadcast %47 : f32 to vector<8x128xf32>
    %49 = arith.mulf %46, %48 : vector<8x128xf32>
    %50 = arith.addf %38, %49 : vector<8x128xf32>
    %c4 = arith.constant 4 : index
    %51 = memref.load %arg1[%c4] : memref<32xf32, #tpu.memory_space<smem>>
    %52 = vector.broadcast %51 : f32 to vector<8x128xf32>
    %53 = arith.mulf %0, %52 : vector<8x128xf32>
    %c4_14 = arith.constant 4 : index
    %54 = memref.load %arg2[%c4_14] : memref<32xf32, #tpu.memory_space<smem>>
    %55 = vector.broadcast %54 : f32 to vector<8x128xf32>
    %56 = arith.addf %53, %55 : vector<8x128xf32>
    %cst_15 = arith.constant 0.000000e+00 : f32
    %57 = vector.broadcast %cst_15 : f32 to vector<8x128xf32>
    %58 = arith.maximumf %56, %57 : vector<8x128xf32>
    %c4_16 = arith.constant 4 : index
    %59 = memref.load %arg3[%c4_16] : memref<32xf32, #tpu.memory_space<smem>>
    %60 = vector.broadcast %59 : f32 to vector<8x128xf32>
    %61 = arith.mulf %58, %60 : vector<8x128xf32>
    %62 = arith.addf %50, %61 : vector<8x128xf32>
    %c5 = arith.constant 5 : index
    %63 = memref.load %arg1[%c5] : memref<32xf32, #tpu.memory_space<smem>>
    %64 = vector.broadcast %63 : f32 to vector<8x128xf32>
    %65 = arith.mulf %0, %64 : vector<8x128xf32>
    %c5_17 = arith.constant 5 : index
    %66 = memref.load %arg2[%c5_17] : memref<32xf32, #tpu.memory_space<smem>>
    %67 = vector.broadcast %66 : f32 to vector<8x128xf32>
    %68 = arith.addf %65, %67 : vector<8x128xf32>
    %cst_18 = arith.constant 0.000000e+00 : f32
    %69 = vector.broadcast %cst_18 : f32 to vector<8x128xf32>
    %70 = arith.maximumf %68, %69 : vector<8x128xf32>
    %c5_19 = arith.constant 5 : index
    %71 = memref.load %arg3[%c5_19] : memref<32xf32, #tpu.memory_space<smem>>
    %72 = vector.broadcast %71 : f32 to vector<8x128xf32>
    %73 = arith.mulf %70, %72 : vector<8x128xf32>
    %74 = arith.addf %62, %73 : vector<8x128xf32>
    %c6 = arith.constant 6 : index
    %75 = memref.load %arg1[%c6] : memref<32xf32, #tpu.memory_space<smem>>
    %76 = vector.broadcast %75 : f32 to vector<8x128xf32>
    %77 = arith.mulf %0, %76 : vector<8x128xf32>
    %c6_20 = arith.constant 6 : index
    %78 = memref.load %arg2[%c6_20] : memref<32xf32, #tpu.memory_space<smem>>
    %79 = vector.broadcast %78 : f32 to vector<8x128xf32>
    %80 = arith.addf %77, %79 : vector<8x128xf32>
    %cst_21 = arith.constant 0.000000e+00 : f32
    %81 = vector.broadcast %cst_21 : f32 to vector<8x128xf32>
    %82 = arith.maximumf %80, %81 : vector<8x128xf32>
    %c6_22 = arith.constant 6 : index
    %83 = memref.load %arg3[%c6_22] : memref<32xf32, #tpu.memory_space<smem>>
    %84 = vector.broadcast %83 : f32 to vector<8x128xf32>
    %85 = arith.mulf %82, %84 : vector<8x128xf32>
    %86 = arith.addf %74, %85 : vector<8x128xf32>
    %c7 = arith.constant 7 : index
    %87 = memref.load %arg1[%c7] : memref<32xf32, #tpu.memory_space<smem>>
    %88 = vector.broadcast %87 : f32 to vector<8x128xf32>
    %89 = arith.mulf %0, %88 : vector<8x128xf32>
    %c7_23 = arith.constant 7 : index
    %90 = memref.load %arg2[%c7_23] : memref<32xf32, #tpu.memory_space<smem>>
    %91 = vector.broadcast %90 : f32 to vector<8x128xf32>
    %92 = arith.addf %89, %91 : vector<8x128xf32>
    %cst_24 = arith.constant 0.000000e+00 : f32
    %93 = vector.broadcast %cst_24 : f32 to vector<8x128xf32>
    %94 = arith.maximumf %92, %93 : vector<8x128xf32>
    %c7_25 = arith.constant 7 : index
    %95 = memref.load %arg3[%c7_25] : memref<32xf32, #tpu.memory_space<smem>>
    %96 = vector.broadcast %95 : f32 to vector<8x128xf32>
    %97 = arith.mulf %94, %96 : vector<8x128xf32>
    %98 = arith.addf %86, %97 : vector<8x128xf32>
    %c8 = arith.constant 8 : index
    %99 = memref.load %arg1[%c8] : memref<32xf32, #tpu.memory_space<smem>>
    %100 = vector.broadcast %99 : f32 to vector<8x128xf32>
    %101 = arith.mulf %0, %100 : vector<8x128xf32>
    %c8_26 = arith.constant 8 : index
    %102 = memref.load %arg2[%c8_26] : memref<32xf32, #tpu.memory_space<smem>>
    %103 = vector.broadcast %102 : f32 to vector<8x128xf32>
    %104 = arith.addf %101, %103 : vector<8x128xf32>
    %cst_27 = arith.constant 0.000000e+00 : f32
    %105 = vector.broadcast %cst_27 : f32 to vector<8x128xf32>
    %106 = arith.maximumf %104, %105 : vector<8x128xf32>
    %c8_28 = arith.constant 8 : index
    %107 = memref.load %arg3[%c8_28] : memref<32xf32, #tpu.memory_space<smem>>
    %108 = vector.broadcast %107 : f32 to vector<8x128xf32>
    %109 = arith.mulf %106, %108 : vector<8x128xf32>
    %110 = arith.addf %98, %109 : vector<8x128xf32>
    %c9 = arith.constant 9 : index
    %111 = memref.load %arg1[%c9] : memref<32xf32, #tpu.memory_space<smem>>
    %112 = vector.broadcast %111 : f32 to vector<8x128xf32>
    %113 = arith.mulf %0, %112 : vector<8x128xf32>
    %c9_29 = arith.constant 9 : index
    %114 = memref.load %arg2[%c9_29] : memref<32xf32, #tpu.memory_space<smem>>
    %115 = vector.broadcast %114 : f32 to vector<8x128xf32>
    %116 = arith.addf %113, %115 : vector<8x128xf32>
    %cst_30 = arith.constant 0.000000e+00 : f32
    %117 = vector.broadcast %cst_30 : f32 to vector<8x128xf32>
    %118 = arith.maximumf %116, %117 : vector<8x128xf32>
    %c9_31 = arith.constant 9 : index
    %119 = memref.load %arg3[%c9_31] : memref<32xf32, #tpu.memory_space<smem>>
    %120 = vector.broadcast %119 : f32 to vector<8x128xf32>
    %121 = arith.mulf %118, %120 : vector<8x128xf32>
    %122 = arith.addf %110, %121 : vector<8x128xf32>
    %c10 = arith.constant 10 : index
    %123 = memref.load %arg1[%c10] : memref<32xf32, #tpu.memory_space<smem>>
    %124 = vector.broadcast %123 : f32 to vector<8x128xf32>
    %125 = arith.mulf %0, %124 : vector<8x128xf32>
    %c10_32 = arith.constant 10 : index
    %126 = memref.load %arg2[%c10_32] : memref<32xf32, #tpu.memory_space<smem>>
    %127 = vector.broadcast %126 : f32 to vector<8x128xf32>
    %128 = arith.addf %125, %127 : vector<8x128xf32>
    %cst_33 = arith.constant 0.000000e+00 : f32
    %129 = vector.broadcast %cst_33 : f32 to vector<8x128xf32>
    %130 = arith.maximumf %128, %129 : vector<8x128xf32>
    %c10_34 = arith.constant 10 : index
    %131 = memref.load %arg3[%c10_34] : memref<32xf32, #tpu.memory_space<smem>>
    %132 = vector.broadcast %131 : f32 to vector<8x128xf32>
    %133 = arith.mulf %130, %132 : vector<8x128xf32>
    %134 = arith.addf %122, %133 : vector<8x128xf32>
    %c11 = arith.constant 11 : index
    %135 = memref.load %arg1[%c11] : memref<32xf32, #tpu.memory_space<smem>>
    %136 = vector.broadcast %135 : f32 to vector<8x128xf32>
    %137 = arith.mulf %0, %136 : vector<8x128xf32>
    %c11_35 = arith.constant 11 : index
    %138 = memref.load %arg2[%c11_35] : memref<32xf32, #tpu.memory_space<smem>>
    %139 = vector.broadcast %138 : f32 to vector<8x128xf32>
    %140 = arith.addf %137, %139 : vector<8x128xf32>
    %cst_36 = arith.constant 0.000000e+00 : f32
    %141 = vector.broadcast %cst_36 : f32 to vector<8x128xf32>
    %142 = arith.maximumf %140, %141 : vector<8x128xf32>
    %c11_37 = arith.constant 11 : index
    %143 = memref.load %arg3[%c11_37] : memref<32xf32, #tpu.memory_space<smem>>
    %144 = vector.broadcast %143 : f32 to vector<8x128xf32>
    %145 = arith.mulf %142, %144 : vector<8x128xf32>
    %146 = arith.addf %134, %145 : vector<8x128xf32>
    %c12 = arith.constant 12 : index
    %147 = memref.load %arg1[%c12] : memref<32xf32, #tpu.memory_space<smem>>
    %148 = vector.broadcast %147 : f32 to vector<8x128xf32>
    %149 = arith.mulf %0, %148 : vector<8x128xf32>
    %c12_38 = arith.constant 12 : index
    %150 = memref.load %arg2[%c12_38] : memref<32xf32, #tpu.memory_space<smem>>
    %151 = vector.broadcast %150 : f32 to vector<8x128xf32>
    %152 = arith.addf %149, %151 : vector<8x128xf32>
    %cst_39 = arith.constant 0.000000e+00 : f32
    %153 = vector.broadcast %cst_39 : f32 to vector<8x128xf32>
    %154 = arith.maximumf %152, %153 : vector<8x128xf32>
    %c12_40 = arith.constant 12 : index
    %155 = memref.load %arg3[%c12_40] : memref<32xf32, #tpu.memory_space<smem>>
    %156 = vector.broadcast %155 : f32 to vector<8x128xf32>
    %157 = arith.mulf %154, %156 : vector<8x128xf32>
    %158 = arith.addf %146, %157 : vector<8x128xf32>
    %c13 = arith.constant 13 : index
    %159 = memref.load %arg1[%c13] : memref<32xf32, #tpu.memory_space<smem>>
    %160 = vector.broadcast %159 : f32 to vector<8x128xf32>
    %161 = arith.mulf %0, %160 : vector<8x128xf32>
    %c13_41 = arith.constant 13 : index
    %162 = memref.load %arg2[%c13_41] : memref<32xf32, #tpu.memory_space<smem>>
    %163 = vector.broadcast %162 : f32 to vector<8x128xf32>
    %164 = arith.addf %161, %163 : vector<8x128xf32>
    %cst_42 = arith.constant 0.000000e+00 : f32
    %165 = vector.broadcast %cst_42 : f32 to vector<8x128xf32>
    %166 = arith.maximumf %164, %165 : vector<8x128xf32>
    %c13_43 = arith.constant 13 : index
    %167 = memref.load %arg3[%c13_43] : memref<32xf32, #tpu.memory_space<smem>>
    %168 = vector.broadcast %167 : f32 to vector<8x128xf32>
    %169 = arith.mulf %166, %168 : vector<8x128xf32>
    %170 = arith.addf %158, %169 : vector<8x128xf32>
    %c14 = arith.constant 14 : index
    %171 = memref.load %arg1[%c14] : memref<32xf32, #tpu.memory_space<smem>>
    %172 = vector.broadcast %171 : f32 to vector<8x128xf32>
    %173 = arith.mulf %0, %172 : vector<8x128xf32>
    %c14_44 = arith.constant 14 : index
    %174 = memref.load %arg2[%c14_44] : memref<32xf32, #tpu.memory_space<smem>>
    %175 = vector.broadcast %174 : f32 to vector<8x128xf32>
    %176 = arith.addf %173, %175 : vector<8x128xf32>
    %cst_45 = arith.constant 0.000000e+00 : f32
    %177 = vector.broadcast %cst_45 : f32 to vector<8x128xf32>
    %178 = arith.maximumf %176, %177 : vector<8x128xf32>
    %c14_46 = arith.constant 14 : index
    %179 = memref.load %arg3[%c14_46] : memref<32xf32, #tpu.memory_space<smem>>
    %180 = vector.broadcast %179 : f32 to vector<8x128xf32>
    %181 = arith.mulf %178, %180 : vector<8x128xf32>
    %182 = arith.addf %170, %181 : vector<8x128xf32>
    %c15 = arith.constant 15 : index
    %183 = memref.load %arg1[%c15] : memref<32xf32, #tpu.memory_space<smem>>
    %184 = vector.broadcast %183 : f32 to vector<8x128xf32>
    %185 = arith.mulf %0, %184 : vector<8x128xf32>
    %c15_47 = arith.constant 15 : index
    %186 = memref.load %arg2[%c15_47] : memref<32xf32, #tpu.memory_space<smem>>
    %187 = vector.broadcast %186 : f32 to vector<8x128xf32>
    %188 = arith.addf %185, %187 : vector<8x128xf32>
    %cst_48 = arith.constant 0.000000e+00 : f32
    %189 = vector.broadcast %cst_48 : f32 to vector<8x128xf32>
    %190 = arith.maximumf %188, %189 : vector<8x128xf32>
    %c15_49 = arith.constant 15 : index
    %191 = memref.load %arg3[%c15_49] : memref<32xf32, #tpu.memory_space<smem>>
    %192 = vector.broadcast %191 : f32 to vector<8x128xf32>
    %193 = arith.mulf %190, %192 : vector<8x128xf32>
    %194 = arith.addf %182, %193 : vector<8x128xf32>
    %c16 = arith.constant 16 : index
    %195 = memref.load %arg1[%c16] : memref<32xf32, #tpu.memory_space<smem>>
    %196 = vector.broadcast %195 : f32 to vector<8x128xf32>
    %197 = arith.mulf %0, %196 : vector<8x128xf32>
    %c16_50 = arith.constant 16 : index
    %198 = memref.load %arg2[%c16_50] : memref<32xf32, #tpu.memory_space<smem>>
    %199 = vector.broadcast %198 : f32 to vector<8x128xf32>
    %200 = arith.addf %197, %199 : vector<8x128xf32>
    %cst_51 = arith.constant 0.000000e+00 : f32
    %201 = vector.broadcast %cst_51 : f32 to vector<8x128xf32>
    %202 = arith.maximumf %200, %201 : vector<8x128xf32>
    %c16_52 = arith.constant 16 : index
    %203 = memref.load %arg3[%c16_52] : memref<32xf32, #tpu.memory_space<smem>>
    %204 = vector.broadcast %203 : f32 to vector<8x128xf32>
    %205 = arith.mulf %202, %204 : vector<8x128xf32>
    %206 = arith.addf %194, %205 : vector<8x128xf32>
    %c17 = arith.constant 17 : index
    %207 = memref.load %arg1[%c17] : memref<32xf32, #tpu.memory_space<smem>>
    %208 = vector.broadcast %207 : f32 to vector<8x128xf32>
    %209 = arith.mulf %0, %208 : vector<8x128xf32>
    %c17_53 = arith.constant 17 : index
    %210 = memref.load %arg2[%c17_53] : memref<32xf32, #tpu.memory_space<smem>>
    %211 = vector.broadcast %210 : f32 to vector<8x128xf32>
    %212 = arith.addf %209, %211 : vector<8x128xf32>
    %cst_54 = arith.constant 0.000000e+00 : f32
    %213 = vector.broadcast %cst_54 : f32 to vector<8x128xf32>
    %214 = arith.maximumf %212, %213 : vector<8x128xf32>
    %c17_55 = arith.constant 17 : index
    %215 = memref.load %arg3[%c17_55] : memref<32xf32, #tpu.memory_space<smem>>
    %216 = vector.broadcast %215 : f32 to vector<8x128xf32>
    %217 = arith.mulf %214, %216 : vector<8x128xf32>
    %218 = arith.addf %206, %217 : vector<8x128xf32>
    %c18 = arith.constant 18 : index
    %219 = memref.load %arg1[%c18] : memref<32xf32, #tpu.memory_space<smem>>
    %220 = vector.broadcast %219 : f32 to vector<8x128xf32>
    %221 = arith.mulf %0, %220 : vector<8x128xf32>
    %c18_56 = arith.constant 18 : index
    %222 = memref.load %arg2[%c18_56] : memref<32xf32, #tpu.memory_space<smem>>
    %223 = vector.broadcast %222 : f32 to vector<8x128xf32>
    %224 = arith.addf %221, %223 : vector<8x128xf32>
    %cst_57 = arith.constant 0.000000e+00 : f32
    %225 = vector.broadcast %cst_57 : f32 to vector<8x128xf32>
    %226 = arith.maximumf %224, %225 : vector<8x128xf32>
    %c18_58 = arith.constant 18 : index
    %227 = memref.load %arg3[%c18_58] : memref<32xf32, #tpu.memory_space<smem>>
    %228 = vector.broadcast %227 : f32 to vector<8x128xf32>
    %229 = arith.mulf %226, %228 : vector<8x128xf32>
    %230 = arith.addf %218, %229 : vector<8x128xf32>
    %c19 = arith.constant 19 : index
    %231 = memref.load %arg1[%c19] : memref<32xf32, #tpu.memory_space<smem>>
    %232 = vector.broadcast %231 : f32 to vector<8x128xf32>
    %233 = arith.mulf %0, %232 : vector<8x128xf32>
    %c19_59 = arith.constant 19 : index
    %234 = memref.load %arg2[%c19_59] : memref<32xf32, #tpu.memory_space<smem>>
    %235 = vector.broadcast %234 : f32 to vector<8x128xf32>
    %236 = arith.addf %233, %235 : vector<8x128xf32>
    %cst_60 = arith.constant 0.000000e+00 : f32
    %237 = vector.broadcast %cst_60 : f32 to vector<8x128xf32>
    %238 = arith.maximumf %236, %237 : vector<8x128xf32>
    %c19_61 = arith.constant 19 : index
    %239 = memref.load %arg3[%c19_61] : memref<32xf32, #tpu.memory_space<smem>>
    %240 = vector.broadcast %239 : f32 to vector<8x128xf32>
    %241 = arith.mulf %238, %240 : vector<8x128xf32>
    %242 = arith.addf %230, %241 : vector<8x128xf32>
    %c20 = arith.constant 20 : index
    %243 = memref.load %arg1[%c20] : memref<32xf32, #tpu.memory_space<smem>>
    %244 = vector.broadcast %243 : f32 to vector<8x128xf32>
    %245 = arith.mulf %0, %244 : vector<8x128xf32>
    %c20_62 = arith.constant 20 : index
    %246 = memref.load %arg2[%c20_62] : memref<32xf32, #tpu.memory_space<smem>>
    %247 = vector.broadcast %246 : f32 to vector<8x128xf32>
    %248 = arith.addf %245, %247 : vector<8x128xf32>
    %cst_63 = arith.constant 0.000000e+00 : f32
    %249 = vector.broadcast %cst_63 : f32 to vector<8x128xf32>
    %250 = arith.maximumf %248, %249 : vector<8x128xf32>
    %c20_64 = arith.constant 20 : index
    %251 = memref.load %arg3[%c20_64] : memref<32xf32, #tpu.memory_space<smem>>
    %252 = vector.broadcast %251 : f32 to vector<8x128xf32>
    %253 = arith.mulf %250, %252 : vector<8x128xf32>
    %254 = arith.addf %242, %253 : vector<8x128xf32>
    %c21 = arith.constant 21 : index
    %255 = memref.load %arg1[%c21] : memref<32xf32, #tpu.memory_space<smem>>
    %256 = vector.broadcast %255 : f32 to vector<8x128xf32>
    %257 = arith.mulf %0, %256 : vector<8x128xf32>
    %c21_65 = arith.constant 21 : index
    %258 = memref.load %arg2[%c21_65] : memref<32xf32, #tpu.memory_space<smem>>
    %259 = vector.broadcast %258 : f32 to vector<8x128xf32>
    %260 = arith.addf %257, %259 : vector<8x128xf32>
    %cst_66 = arith.constant 0.000000e+00 : f32
    %261 = vector.broadcast %cst_66 : f32 to vector<8x128xf32>
    %262 = arith.maximumf %260, %261 : vector<8x128xf32>
    %c21_67 = arith.constant 21 : index
    %263 = memref.load %arg3[%c21_67] : memref<32xf32, #tpu.memory_space<smem>>
    %264 = vector.broadcast %263 : f32 to vector<8x128xf32>
    %265 = arith.mulf %262, %264 : vector<8x128xf32>
    %266 = arith.addf %254, %265 : vector<8x128xf32>
    %c22 = arith.constant 22 : index
    %267 = memref.load %arg1[%c22] : memref<32xf32, #tpu.memory_space<smem>>
    %268 = vector.broadcast %267 : f32 to vector<8x128xf32>
    %269 = arith.mulf %0, %268 : vector<8x128xf32>
    %c22_68 = arith.constant 22 : index
    %270 = memref.load %arg2[%c22_68] : memref<32xf32, #tpu.memory_space<smem>>
    %271 = vector.broadcast %270 : f32 to vector<8x128xf32>
    %272 = arith.addf %269, %271 : vector<8x128xf32>
    %cst_69 = arith.constant 0.000000e+00 : f32
    %273 = vector.broadcast %cst_69 : f32 to vector<8x128xf32>
    %274 = arith.maximumf %272, %273 : vector<8x128xf32>
    %c22_70 = arith.constant 22 : index
    %275 = memref.load %arg3[%c22_70] : memref<32xf32, #tpu.memory_space<smem>>
    %276 = vector.broadcast %275 : f32 to vector<8x128xf32>
    %277 = arith.mulf %274, %276 : vector<8x128xf32>
    %278 = arith.addf %266, %277 : vector<8x128xf32>
    %c23 = arith.constant 23 : index
    %279 = memref.load %arg1[%c23] : memref<32xf32, #tpu.memory_space<smem>>
    %280 = vector.broadcast %279 : f32 to vector<8x128xf32>
    %281 = arith.mulf %0, %280 : vector<8x128xf32>
    %c23_71 = arith.constant 23 : index
    %282 = memref.load %arg2[%c23_71] : memref<32xf32, #tpu.memory_space<smem>>
    %283 = vector.broadcast %282 : f32 to vector<8x128xf32>
    %284 = arith.addf %281, %283 : vector<8x128xf32>
    %cst_72 = arith.constant 0.000000e+00 : f32
    %285 = vector.broadcast %cst_72 : f32 to vector<8x128xf32>
    %286 = arith.maximumf %284, %285 : vector<8x128xf32>
    %c23_73 = arith.constant 23 : index
    %287 = memref.load %arg3[%c23_73] : memref<32xf32, #tpu.memory_space<smem>>
    %288 = vector.broadcast %287 : f32 to vector<8x128xf32>
    %289 = arith.mulf %286, %288 : vector<8x128xf32>
    %290 = arith.addf %278, %289 : vector<8x128xf32>
    %c24 = arith.constant 24 : index
    %291 = memref.load %arg1[%c24] : memref<32xf32, #tpu.memory_space<smem>>
    %292 = vector.broadcast %291 : f32 to vector<8x128xf32>
    %293 = arith.mulf %0, %292 : vector<8x128xf32>
    %c24_74 = arith.constant 24 : index
    %294 = memref.load %arg2[%c24_74] : memref<32xf32, #tpu.memory_space<smem>>
    %295 = vector.broadcast %294 : f32 to vector<8x128xf32>
    %296 = arith.addf %293, %295 : vector<8x128xf32>
    %cst_75 = arith.constant 0.000000e+00 : f32
    %297 = vector.broadcast %cst_75 : f32 to vector<8x128xf32>
    %298 = arith.maximumf %296, %297 : vector<8x128xf32>
    %c24_76 = arith.constant 24 : index
    %299 = memref.load %arg3[%c24_76] : memref<32xf32, #tpu.memory_space<smem>>
    %300 = vector.broadcast %299 : f32 to vector<8x128xf32>
    %301 = arith.mulf %298, %300 : vector<8x128xf32>
    %302 = arith.addf %290, %301 : vector<8x128xf32>
    %c25 = arith.constant 25 : index
    %303 = memref.load %arg1[%c25] : memref<32xf32, #tpu.memory_space<smem>>
    %304 = vector.broadcast %303 : f32 to vector<8x128xf32>
    %305 = arith.mulf %0, %304 : vector<8x128xf32>
    %c25_77 = arith.constant 25 : index
    %306 = memref.load %arg2[%c25_77] : memref<32xf32, #tpu.memory_space<smem>>
    %307 = vector.broadcast %306 : f32 to vector<8x128xf32>
    %308 = arith.addf %305, %307 : vector<8x128xf32>
    %cst_78 = arith.constant 0.000000e+00 : f32
    %309 = vector.broadcast %cst_78 : f32 to vector<8x128xf32>
    %310 = arith.maximumf %308, %309 : vector<8x128xf32>
    %c25_79 = arith.constant 25 : index
    %311 = memref.load %arg3[%c25_79] : memref<32xf32, #tpu.memory_space<smem>>
    %312 = vector.broadcast %311 : f32 to vector<8x128xf32>
    %313 = arith.mulf %310, %312 : vector<8x128xf32>
    %314 = arith.addf %302, %313 : vector<8x128xf32>
    %c26 = arith.constant 26 : index
    %315 = memref.load %arg1[%c26] : memref<32xf32, #tpu.memory_space<smem>>
    %316 = vector.broadcast %315 : f32 to vector<8x128xf32>
    %317 = arith.mulf %0, %316 : vector<8x128xf32>
    %c26_80 = arith.constant 26 : index
    %318 = memref.load %arg2[%c26_80] : memref<32xf32, #tpu.memory_space<smem>>
    %319 = vector.broadcast %318 : f32 to vector<8x128xf32>
    %320 = arith.addf %317, %319 : vector<8x128xf32>
    %cst_81 = arith.constant 0.000000e+00 : f32
    %321 = vector.broadcast %cst_81 : f32 to vector<8x128xf32>
    %322 = arith.maximumf %320, %321 : vector<8x128xf32>
    %c26_82 = arith.constant 26 : index
    %323 = memref.load %arg3[%c26_82] : memref<32xf32, #tpu.memory_space<smem>>
    %324 = vector.broadcast %323 : f32 to vector<8x128xf32>
    %325 = arith.mulf %322, %324 : vector<8x128xf32>
    %326 = arith.addf %314, %325 : vector<8x128xf32>
    %c27 = arith.constant 27 : index
    %327 = memref.load %arg1[%c27] : memref<32xf32, #tpu.memory_space<smem>>
    %328 = vector.broadcast %327 : f32 to vector<8x128xf32>
    %329 = arith.mulf %0, %328 : vector<8x128xf32>
    %c27_83 = arith.constant 27 : index
    %330 = memref.load %arg2[%c27_83] : memref<32xf32, #tpu.memory_space<smem>>
    %331 = vector.broadcast %330 : f32 to vector<8x128xf32>
    %332 = arith.addf %329, %331 : vector<8x128xf32>
    %cst_84 = arith.constant 0.000000e+00 : f32
    %333 = vector.broadcast %cst_84 : f32 to vector<8x128xf32>
    %334 = arith.maximumf %332, %333 : vector<8x128xf32>
    %c27_85 = arith.constant 27 : index
    %335 = memref.load %arg3[%c27_85] : memref<32xf32, #tpu.memory_space<smem>>
    %336 = vector.broadcast %335 : f32 to vector<8x128xf32>
    %337 = arith.mulf %334, %336 : vector<8x128xf32>
    %338 = arith.addf %326, %337 : vector<8x128xf32>
    %c28 = arith.constant 28 : index
    %339 = memref.load %arg1[%c28] : memref<32xf32, #tpu.memory_space<smem>>
    %340 = vector.broadcast %339 : f32 to vector<8x128xf32>
    %341 = arith.mulf %0, %340 : vector<8x128xf32>
    %c28_86 = arith.constant 28 : index
    %342 = memref.load %arg2[%c28_86] : memref<32xf32, #tpu.memory_space<smem>>
    %343 = vector.broadcast %342 : f32 to vector<8x128xf32>
    %344 = arith.addf %341, %343 : vector<8x128xf32>
    %cst_87 = arith.constant 0.000000e+00 : f32
    %345 = vector.broadcast %cst_87 : f32 to vector<8x128xf32>
    %346 = arith.maximumf %344, %345 : vector<8x128xf32>
    %c28_88 = arith.constant 28 : index
    %347 = memref.load %arg3[%c28_88] : memref<32xf32, #tpu.memory_space<smem>>
    %348 = vector.broadcast %347 : f32 to vector<8x128xf32>
    %349 = arith.mulf %346, %348 : vector<8x128xf32>
    %350 = arith.addf %338, %349 : vector<8x128xf32>
    %c29 = arith.constant 29 : index
    %351 = memref.load %arg1[%c29] : memref<32xf32, #tpu.memory_space<smem>>
    %352 = vector.broadcast %351 : f32 to vector<8x128xf32>
    %353 = arith.mulf %0, %352 : vector<8x128xf32>
    %c29_89 = arith.constant 29 : index
    %354 = memref.load %arg2[%c29_89] : memref<32xf32, #tpu.memory_space<smem>>
    %355 = vector.broadcast %354 : f32 to vector<8x128xf32>
    %356 = arith.addf %353, %355 : vector<8x128xf32>
    %cst_90 = arith.constant 0.000000e+00 : f32
    %357 = vector.broadcast %cst_90 : f32 to vector<8x128xf32>
    %358 = arith.maximumf %356, %357 : vector<8x128xf32>
    %c29_91 = arith.constant 29 : index
    %359 = memref.load %arg3[%c29_91] : memref<32xf32, #tpu.memory_space<smem>>
    %360 = vector.broadcast %359 : f32 to vector<8x128xf32>
    %361 = arith.mulf %358, %360 : vector<8x128xf32>
    %362 = arith.addf %350, %361 : vector<8x128xf32>
    %c30 = arith.constant 30 : index
    %363 = memref.load %arg1[%c30] : memref<32xf32, #tpu.memory_space<smem>>
    %364 = vector.broadcast %363 : f32 to vector<8x128xf32>
    %365 = arith.mulf %0, %364 : vector<8x128xf32>
    %c30_92 = arith.constant 30 : index
    %366 = memref.load %arg2[%c30_92] : memref<32xf32, #tpu.memory_space<smem>>
    %367 = vector.broadcast %366 : f32 to vector<8x128xf32>
    %368 = arith.addf %365, %367 : vector<8x128xf32>
    %cst_93 = arith.constant 0.000000e+00 : f32
    %369 = vector.broadcast %cst_93 : f32 to vector<8x128xf32>
    %370 = arith.maximumf %368, %369 : vector<8x128xf32>
    %c30_94 = arith.constant 30 : index
    %371 = memref.load %arg3[%c30_94] : memref<32xf32, #tpu.memory_space<smem>>
    %372 = vector.broadcast %371 : f32 to vector<8x128xf32>
    %373 = arith.mulf %370, %372 : vector<8x128xf32>
    %374 = arith.addf %362, %373 : vector<8x128xf32>
    %c31 = arith.constant 31 : index
    %375 = memref.load %arg1[%c31] : memref<32xf32, #tpu.memory_space<smem>>
    %376 = vector.broadcast %375 : f32 to vector<8x128xf32>
    %377 = arith.mulf %0, %376 : vector<8x128xf32>
    %c31_95 = arith.constant 31 : index
    %378 = memref.load %arg2[%c31_95] : memref<32xf32, #tpu.memory_space<smem>>
    %379 = vector.broadcast %378 : f32 to vector<8x128xf32>
    %380 = arith.addf %377, %379 : vector<8x128xf32>
    %cst_96 = arith.constant 0.000000e+00 : f32
    %381 = vector.broadcast %cst_96 : f32 to vector<8x128xf32>
    %382 = arith.maximumf %380, %381 : vector<8x128xf32>
    %c31_97 = arith.constant 31 : index
    %383 = memref.load %arg3[%c31_97] : memref<32xf32, #tpu.memory_space<smem>>
    %384 = vector.broadcast %383 : f32 to vector<8x128xf32>
    %385 = arith.mulf %382, %384 : vector<8x128xf32>
    %386 = arith.addf %374, %385 : vector<8x128xf32>
    %c0_98 = arith.constant 0 : index
    %c0_99 = arith.constant 0 : index
    %387 = vector.load %arg6[%c0_98, %c0_99] : memref<8x128xf32, #tpu.memory_space<vmem>>, vector<8x128xf32>
    tpu.vector_store %arg6[%c0_98, %c0_99], %386 {strides = array<i32>} : memref<8x128xf32, #tpu.memory_space<vmem>>, vector<8x128xf32>,
    return
  }
  func.func @transform_0(%arg0: i32) -> i32 {
    %c0_i32 = arith.constant 0 : i32
    %c0_i32_0 = arith.constant 0 : i32
    return %c0_i32 : i32
  }
  func.func @transform_1(%arg0: i32) -> i32 {
    %c0_i32 = arith.constant 0 : i32
    %c0_i32_0 = arith.constant 0 : i32
    return %c0_i32 : i32
  }
  func.func @transform_2(%arg0: i32) -> i32 {
    %c0_i32 = arith.constant 0 : i32
    %c0_i32_0 = arith.constant 0 : i32
    return %c0_i32 : i32
  }
  func.func @transform_3(%arg0: i32) -> i32 {
    %c0_i32 = arith.constant 0 : i32
    %c0_i32_0 = arith.constant 0 : i32
    return %c0_i32 : i32
  }
  func.func @transform_4(%arg0: i32) -> (i32, i32) {
    %c0_i32 = arith.constant 0 : i32
    %c0_i32_0 = arith.constant 0 : i32
    return %arg0, %c0_i32 : i32, i32
  }
  func.func @transform_5(%arg0: i32) -> (i32, i32) {
    %c0_i32 = arith.constant 0 : i32
    %c0_i32_0 = arith.constant 0 : i32
    return %arg0, %c0_i32 : i32, i32
  }
}

</mosaic_0001>

<llo_original>
// kernel: tpu_custom_call.1
$region0: #{tpu_custom_call.1}
  #allocation0 [shape = 'u32[]', space=smem, size = 0x4, offset = 0x4, fixed_abs, tag = 'smem constant byte address 0x4 - core index']
  #allocation1 [shape = 'u32[144,128]{1,0:T(1,128)}', space=vmem, size = 0x12000, scoped, tag = 'internal scratch']
  #allocation2 [shape = 'f32[1]{0:T(128)S(6)}', space=smem, size = 0x200, scoped, tag = 'scoped memory for tpu_custom_call.1']
  %s0 = inlined_call_operand.vmem [shape: f32[32], index: 0, kind: input, shape index: {}]
  %s1 = inlined_call_operand.vmem [shape: f32[32], index: 1, kind: input, shape index: {}]
  %s2 = inlined_call_operand.vmem [shape: f32[32], index: 2, kind: input, shape index: {}]
  %s3 = inlined_call_operand.<no memory space> [shape: f32[1], index: 3, kind: input, shape index: {}]
  %s4 = inlined_call_operand.hbm [shape: f32[16,128], index: 4, kind: input, shape index: {}]
  %s5 = inlined_call_operand.hbm [shape: f32[16,128], index: 5, kind: output, shape index: {}]
  %s6 = sld [smem:[#allocation0]]
  $region69: #{tpu_custom_call.1} parent=0
    _
  %s8 = ssub.s32 1, %s6
  %s9 = scalar_select 0, %s8, %s6
  %10 = sst [smem:[#allocation2]] %s3
  $region1: #{tpu_custom_call.1} parent=0
    #allocation3 [shape = 'u8[512]{0}', space=smem, size = 0x200, scoped, tag = 'input window, operand 0, single buffered']
    #allocation4 [shape = 's32[2]{0}', space=sflag, size = 0x8, scoped, tag = 'scoped memory for tpu_custom_call.1']
    #allocation5 [shape = 's32[2]{0}', space=sflag, size = 0x8, scoped, tag = 'scoped memory for tpu_custom_call.1']
    #allocation6 [shape = 's32[2]{0}', space=sflag, size = 0x8, scoped, tag = 'scoped memory for tpu_custom_call.1']
    #allocation7 [shape = 'u8[512]{0}', space=smem, size = 0x200, scoped, tag = 'input window, operand 1, single buffered']
    #allocation8 [shape = 's32[1]{0}', space=sflag, size = 0x4, scoped, tag = 'scoped memory for tpu_custom_call.1']
    #allocation9 [shape = 'u8[512]{0}', space=smem, size = 0x200, scoped, tag = 'input window, operand 2, single buffered']
    #allocation10 [shape = 'u8[8192]{0}', space=vmem, size = 0x2000, scoped, tag = 'input window, operand 4']
    #allocation11 [shape = 'u8[8192]{0}', space=vmem, size = 0x2000, scoped, tag = 'output window, operand 0']
    %11 = vsyncpa [#allocation6], 0
    %12 = vsyncpa [#allocation8], 0
    %13 = vsyncpa [#allocation4], 0
    %s14 = scalar_lea.sflag [#allocation4], 1
    %15 = vsyncpa %s14, 0
    %16 = vsyncpa [#allocation5], 0
    %s17 = scalar_lea.sflag [#allocation5], 1
    %18 = vsyncpa %s17, 0
    loop: start=0, step=1, limit=4
    $region2: #{tpu_custom_call.1} parent=1 // loop_pre_header
      _
    $region3: #{tpu_custom_call.1} parent=1 // loop_header
      %s20 = sphi 0, %s24
      %p21 = scmp.ge.s32.totalorder %s20, 4
      %s28 = sphi 0, %s28
      %s30 = sphi 0, %s28
      %s31 = sphi 0, %s30
      %s45 = sphi 0, %s31
      %s49 = sphi 0, %s49
      %s51 = sphi 0, %s49
      %s52 = sphi 0, %s51
      %s66 = sphi 0, %s52
      %s70 = sphi 0, %s70
      %s72 = sphi 0, %s70
      %s73 = sphi 0, %s72
      %s87 = sphi 0, %s73
      %s91 = sphi 0, %s91
      %s93 = sphi 0, %s91
      %s94 = sphi 0, %s93
      %s108 = sphi 0, %s94
      %s114 = sphi 0, %s116
      %s117 = sphi 0, %s114
      %s118 = sphi 0, %s117
      %s134 = sphi 0, %s118
      %s140 = sphi 0, %s142
      %s143 = sphi 0, %s140
      %s144 = sphi 0, %s143
      %s160 = sphi 0, %s144
    $region4: #{tpu_custom_call.1} parent=1 // loop_header_branch
      %23 = sbr.rel (%p21) target = $region8
    $region5: #{tpu_custom_call.1} parent=1 // loop_body
      %s25 = ssub.s32 %s20, 1
      %s26 = ssub.s32 %s20, 2
      %s27 = sadd.s32 %s20, 1
      %s29 = sadd.s32 %s28, 1
      %p32 = scmp.eq.s32.totalorder %s20, 1
      %p33 = scmp.ne.s32.totalorder %s28, %s30
      %p34 = scmp.eq.s32.totalorder %s20, 0
      %p35 = por %p33, %p34
      %p36 = scmp.ne.s32.totalorder %s28, %s30
      %p37 = scmp.eq.s32.totalorder %s25, 1
      %p38 = por %p36, %p37
      %p39 = scmp.ne.s32.totalorder %s30, %s31
      %p40 = scmp.eq.s32.totalorder %s25, 0
      %p41 = por %p39, %p40
      %p42 = scmp.ne.s32.totalorder %s30, %s31
      %p43 = scmp.eq.s32.totalorder %s26, 1
      %p44 = por %p42, %p43
      %p46 = scmp.ne.s32.totalorder %s31, %s45
      %p47 = scmp.eq.s32.totalorder %s26, 0
      %p48 = por %p46, %p47
      %s50 = sadd.s32 %s49, 1
      %p53 = scmp.eq.s32.totalorder %s20, 1
      %p54 = scmp.ne.s32.totalorder %s49, %s51
      %p55 = scmp.eq.s32.totalorder %s20, 0
      %p56 = por %p54, %p55
      %p57 = scmp.ne.s32.totalorder %s49, %s51
      %p58 = scmp.eq.s32.totalorder %s25, 1
      %p59 = por %p57, %p58
      %p60 = scmp.ne.s32.totalorder %s51, %s52
      %p61 = scmp.eq.s32.totalorder %s25, 0
      %p62 = por %p60, %p61
      %p63 = scmp.ne.s32.totalorder %s51, %s52
      %p64 = scmp.eq.s32.totalorder %s26, 1
      %p65 = por %p63, %p64
      %p67 = scmp.ne.s32.totalorder %s52, %s66
      %p68 = scmp.eq.s32.totalorder %s26, 0
      %p69 = por %p67, %p68
      %s71 = sadd.s32 %s70, 1
      %p74 = scmp.eq.s32.totalorder %s20, 1
      %p75 = scmp.ne.s32.totalorder %s70, %s72
      %p76 = scmp.eq.s32.totalorder %s20, 0
      %p77 = por %p75, %p76
      %p78 = scmp.ne.s32.totalorder %s70, %s72
      %p79 = scmp.eq.s32.totalorder %s25, 1
      %p80 = por %p78, %p79
      %p81 = scmp.ne.s32.totalorder %s72, %s73
      %p82 = scmp.eq.s32.totalorder %s25, 0
      %p83 = por %p81, %p82
      %p84 = scmp.ne.s32.totalorder %s72, %s73
      %p85 = scmp.eq.s32.totalorder %s26, 1
      %p86 = por %p84, %p85
      %p88 = scmp.ne.s32.totalorder %s73, %s87
      %p89 = scmp.eq.s32.totalorder %s26, 0
      %p90 = por %p88, %p89
      %s92 = sadd.s32 %s91, 1
      %p95 = scmp.eq.s32.totalorder %s20, 1
      %p96 = scmp.ne.s32.totalorder %s91, %s93
      %p97 = scmp.eq.s32.totalorder %s20, 0
      %p98 = por %p96, %p97
      %p99 = scmp.ne.s32.totalorder %s91, %s93
      %p100 = scmp.eq.s32.totalorder %s25, 1
      %p101 = por %p99, %p100
      %p102 = scmp.ne.s32.totalorder %s93, %s94
      %p103 = scmp.eq.s32.totalorder %s25, 0
      %p104 = por %p102, %p103
      %p105 = scmp.ne.s32.totalorder %s93, %s94
      %p106 = scmp.eq.s32.totalorder %s26, 1
      %p107 = por %p105, %p106
      %p109 = scmp.ne.s32.totalorder %s94, %s108
      %p110 = scmp.eq.s32.totalorder %s26, 0
      %p111 = por %p109, %p110
      %s112 = ssub.s32 %s20, %s27
      %p113 = scmp.eq.s32.totalorder %s112, 0
      %s115 = sadd.s32 %s114, 1
      %s116 = scalar_select %p113, %s114, %s115
      %p119 = pneg %p113
      %p120 = scmp.eq.s32.totalorder %s20, 1
      %p121 = por %p119, %p120
      %p122 = scmp.ne.s32.totalorder %s114, %s117
      %p123 = scmp.eq.s32.totalorder %s20, 0
      %p124 = por %p122, %p123
      %p125 = scmp.ne.s32.totalorder %s114, %s117
      %p126 = scmp.eq.s32.totalorder %s25, 1
      %p127 = por %p125, %p126
      %p128 = scmp.ne.s32.totalorder %s117, %s118
      %p129 = scmp.eq.s32.totalorder %s25, 0
      %p130 = por %p128, %p129
      %p131 = scmp.ne.s32.totalorder %s117, %s118
      %p132 = scmp.eq.s32.totalorder %s26, 1
      %p133 = por %p131, %p132
      %p135 = scmp.ne.s32.totalorder %s118, %s134
      %p136 = scmp.eq.s32.totalorder %s26, 0
      %p137 = por %p135, %p136
      %s138 = ssub.s32 %s20, %s27
      %p139 = scmp.eq.s32.totalorder %s138, 0
      %s141 = sadd.s32 %s140, 1
      %s142 = scalar_select %p139, %s140, %s141
      %p145 = pneg %p139
      %p146 = scmp.eq.s32.totalorder %s20, 1
      %p147 = por %p145, %p146
      %p148 = scmp.ne.s32.totalorder %s140, %s143
      %p149 = scmp.eq.s32.totalorder %s20, 0
      %p150 = por %p148, %p149
      %p151 = scmp.ne.s32.totalorder %s140, %s143
      %p152 = scmp.eq.s32.totalorder %s25, 1
      %p153 = por %p151, %p152
      %p154 = scmp.ne.s32.totalorder %s143, %s144
      %p155 = scmp.eq.s32.totalorder %s25, 0
      %p156 = por %p154, %p155
      %p157 = scmp.ne.s32.totalorder %s143, %s144
      %p158 = scmp.eq.s32.totalorder %s26, 1
      %p159 = por %p157, %p158
      %p161 = scmp.ne.s32.totalorder %s144, %s160
      %p162 = scmp.eq.s32.totalorder %s26, 0
      %p163 = por %p161, %p162
      %p164 = scmp.le.s32.totalorder 1, %s20
      %p165 = scmp.lt.s32.totalorder %s20, 3
      %p166 = pnand %p164, %p165
      %p167 = pneg %p166
      // Predicated region
      $region9: #{tpu_custom_call.1} parent=5 // pred_check
        _
      $region10: #{tpu_custom_call.1} parent=5 // pred_check_branch
        %169 = sbr.rel (%p166) target = $region12
      $region11: #{tpu_custom_call.1} parent=5 // pred_region
        %s170 = ssub.s32 %s20, 1
        // Predicated region
        $region13: #{tpu_custom_call.1} parent=11 // pred_check
          %p171 = pneg %p41
        $region14: #{tpu_custom_call.1} parent=11 // pred_check_branch
          %173 = sbr.rel (%p171) target = $region16
        $region15: #{tpu_custom_call.1} parent=11 // pred_region
          %s175 = ssub.s32 16, 16
          %176 = vsyncadd [#allocation6], %s175
          %s178 = sshll.u32 %s0, 4
          %s179 = int_to_ptr.vmem [resolvable:$true] %s178
          %181 = dma.vmem_to_smem %s179, 16, [#allocation3], [#allocation6]
        $region16: #{tpu_custom_call.1} parent=11 // pred_fallthru
          _
        // Predicated region
        $region17: #{tpu_custom_call.1} parent=11 // pred_check
          %p182 = pneg %p62
        $region18: #{tpu_custom_call.1} parent=11 // pred_check_branch
          %184 = sbr.rel (%p182) target = $region20
        $region19: #{tpu_custom_call.1} parent=11 // pred_region
          %s186 = ssub.s32 16, 16
          %187 = vsyncadd [#allocation8], %s186
          %s189 = sshll.u32 %s1, 4
          %s190 = int_to_ptr.vmem [resolvable:$true] %s189
          %192 = dma.vmem_to_smem %s190, 16, [#allocation7], [#allocation8]
        $region20: #{tpu_custom_call.1} parent=11 // pred_fallthru
          _
        // Predicated region
        $region21: #{tpu_custom_call.1} parent=11 // pred_check
          %p193 = pneg %p83
        $region22: #{tpu_custom_call.1} parent=11 // pred_check_branch
          %195 = sbr.rel (%p193) target = $region24
        $region23: #{tpu_custom_call.1} parent=11 // pred_region
          %s197 = ssub.s32 16, 16
          %198 = vsyncadd [#allocation8], %s197
          %s200 = sshll.u32 %s2, 4
          %s201 = int_to_ptr.vmem [resolvable:$true] %s200
          %203 = dma.vmem_to_smem %s201, 16, [#allocation9], [#allocation8]
        $region24: #{tpu_custom_call.1} parent=11 // pred_fallthru
          _
        // Predicated region
        $region25: #{tpu_custom_call.1} parent=11 // pred_check
          %p204 = pneg %p104
        $region26: #{tpu_custom_call.1} parent=11 // pred_check_branch
          %206 = sbr.rel (%p204) target = $region28
        $region27: #{tpu_custom_call.1} parent=11 // pred_region
          _
        $region28: #{tpu_custom_call.1} parent=11 // pred_fallthru
          _
      $region12: #{tpu_custom_call.1} parent=5 // pred_fallthru
        _
      %p207 = scmp.lt.s32.totalorder %s20, 2
      // Predicated region
      $region29: #{tpu_custom_call.1} parent=5 // pred_check
        %p208 = pneg %p207
      $region30: #{tpu_custom_call.1} parent=5 // pred_check_branch
        %210 = sbr.rel (%p208) target = $region32
      $region31: #{tpu_custom_call.1} parent=5 // pred_region
        // Predicated region
        $region33: #{tpu_custom_call.1} parent=31 // pred_check
          %p211 = pneg %p124
        $region34: #{tpu_custom_call.1} parent=31 // pred_check_branch
          %213 = sbr.rel (%p211) target = $region36
        $region35: #{tpu_custom_call.1} parent=31 // pred_region
          %s214 = sand.u32 %s114, 1
          %s215 = scalar_lea.sflag [#allocation4], %s214
          %s216 = sand.u32 %s114, 1
          %s217 = smul.addr %s216, 8
          %s218 = scalar_lea.vmem [#allocation10], %s217
          %s220 = ssub.s32 128, 128
          %221 = vsyncadd %s215, %s220
          %s222 = smul.addr %s20, 128
          %s223 = scalar_lea.hbm %s4, %s222
          %s225 = sshll.u32 %s218, 4
          %s226 = int_to_ptr.vmem [resolvable:$true] %s225
          %228 = dma.hbm_to_vmem [thread:$0]  %s223, 128, %s226, %s215
        $region36: #{tpu_custom_call.1} parent=31 // pred_fallthru
          _
      $region32: #{tpu_custom_call.1} parent=5 // pred_fallthru
        _
      %p229 = scmp.le.s32.totalorder 1, %s20
      %p230 = scmp.lt.s32.totalorder %s20, 3
      %p231 = pnand %p229, %p230
      %p232 = pneg %p231
      // Predicated region
      $region37: #{tpu_custom_call.1} parent=5 // pred_check
        _
      $region38: #{tpu_custom_call.1} parent=5 // pred_check_branch
        %234 = sbr.rel (%p231) target = $region40
      $region39: #{tpu_custom_call.1} parent=5 // pred_region
        %s235 = ssub.s32 %s20, 1
        // Predicated region
        $region41: #{tpu_custom_call.1} parent=39 // pred_check
          %p236 = pneg %p41
        $region42: #{tpu_custom_call.1} parent=39 // pred_check_branch
          %238 = sbr.rel (%p236) target = $region44
        $region43: #{tpu_custom_call.1} parent=39 // pred_region
          %239 = dma.done [#allocation6], 16
        $region44: #{tpu_custom_call.1} parent=39 // pred_fallthru
          _
        // Predicated region
        $region45: #{tpu_custom_call.1} parent=39 // pred_check
          %p240 = pneg %p62
        $region46: #{tpu_custom_call.1} parent=39 // pred_check_branch
          %242 = sbr.rel (%p240) target = $region48
        $region47: #{tpu_custom_call.1} parent=39 // pred_region
          %243 = dma.done [#allocation8], 16
        $region48: #{tpu_custom_call.1} parent=39 // pred_fallthru
          _
        // Predicated region
        $region49: #{tpu_custom_call.1} parent=39 // pred_check
          %p244 = pneg %p83
        $region50: #{tpu_custom_call.1} parent=39 // pred_check_branch
          %246 = sbr.rel (%p244) target = $region52
        $region51: #{tpu_custom_call.1} parent=39 // pred_region
          %247 = dma.done [#allocation8], 16
        $region52: #{tpu_custom_call.1} parent=39 // pred_fallthru
          _
        %s248 = sand.u32 %s117, 1
        %s249 = scalar_lea.sflag [#allocation4], %s248
        %s250 = sand.u32 %s117, 1
        %s251 = smul.addr %s250, 8
        %s252 = scalar_lea.vmem [#allocation10], %s251
        // Predicated region
        $region53: #{tpu_custom_call.1} parent=39 // pred_check
          %p253 = pneg %p130
        $region54: #{tpu_custom_call.1} parent=39 // pred_check_branch
          %255 = sbr.rel (%p253) target = $region56
        $region55: #{tpu_custom_call.1} parent=39 // pred_region
          %256 = dma.done %s249, 128
        $region56: #{tpu_custom_call.1} parent=39 // pred_fallthru
          _
        %257 = sfence
        %p258 = pneg %p41
        %p259 = pneg %p38
        %p260 = pneg %p62
        %p261 = pneg %p59
        %p262 = pneg %p83
        %p263 = pneg %p80
        %p264 = pneg %p104
        %p265 = pneg %p101
        %s266 = sand.u32 %s117, 1
        %s267 = scalar_lea.sflag [#allocation4], %s266
        %s268 = sand.u32 %s117, 1
        %s269 = smul.addr %s268, 8
        %s270 = scalar_lea.vmem [#allocation10], %s269
        %p271 = pneg %p130
        %p272 = pneg %p127
        %p273 = pneg %p156
        %p274 = pneg %p153
        %s275 = sand.u32 %s143, 1
        %s276 = scalar_lea.sflag [#allocation5], %s275
        %s277 = sand.u32 %s143, 1
        %s278 = smul.addr %s277, 8
        %s279 = scalar_lea.vmem [#allocation11], %s278
        %v280 = vld [vmem:[%s252] sm:$0xff]
        %s281 = sld [smem:[#allocation2]]
        %v282 = vstv %s281
        %s283 = sld [smem:[#allocation3]]
        %v284 = vstv %s283
        %v285 = vmul.f32 %v280, %v284
        %s286 = sld [smem:[#allocation7]]
        %v287 = vstv %s286
        %v288 = vadd.f32 %v285, %v287
        %v289 = vmax.f32 %v288, 0.0
        %s290 = sld [smem:[#allocation9]]
        %v291 = vstv %s290
        %v292 = vmul.f32 %v289, %v291
        %v293 = vadd.f32 %v282, %v292
        %s294 = sld [smem:[#allocation3 + $0x1]]
        %v295 = vstv %s294
        %v296 = vmul.f32 %v280, %v295
        %s297 = sld [smem:[#allocation7 + $0x1]]
        %v298 = vstv %s297
        %v299 = vadd.f32 %v296, %v298
        %v300 = vmax.f32 %v299, 0.0
        %s301 = sld [smem:[#allocation9 + $0x1]]
        %v302 = vstv %s301
        %v303 = vmul.f32 %v300, %v302
        %v304 = vadd.f32 %v293, %v303
        %s305 = sld [smem:[#allocation3 + $0x2]]
        %v306 = vstv %s305
        %v307 = vmul.f32 %v280, %v306
        %s308 = sld [smem:[#allocation7 + $0x2]]
        %v309 = vstv %s308
        %v310 = vadd.f32 %v307, %v309
        %v311 = vmax.f32 %v310, 0.0
        %s312 = sld [smem:[#allocation9 + $0x2]]
        %v313 = vstv %s312
        %v314 = vmul.f32 %v311, %v313
        %v315 = vadd.f32 %v304, %v314
        %s316 = sld [smem:[#allocation3 + $0x3]]
        %v317 = vstv %s316
        %v318 = vmul.f32 %v280, %v317
        %s319 = sld [smem:[#allocation7 + $0x3]]
        %v320 = vstv %s319
        %v321 = vadd.f32 %v318, %v320
        %v322 = vmax.f32 %v321, 0.0
        %s323 = sld [smem:[#allocation9 + $0x3]]
        %v324 = vstv %s323
        %v325 = vmul.f32 %v322, %v324
        %v326 = vadd.f32 %v315, %v325
        %s327 = sld [smem:[#allocation3 + $0x4]]
        %v328 = vstv %s327
        %v329 = vmul.f32 %v280, %v328
        %s330 = sld [smem:[#allocation7 + $0x4]]
        %v331 = vstv %s330
        %v332 = vadd.f32 %v329, %v331
        %v333 = vmax.f32 %v332, 0.0
        %s334 = sld [smem:[#allocation9 + $0x4]]
        %v335 = vstv %s334
        %v336 = vmul.f32 %v333, %v335
        %v337 = vadd.f32 %v326, %v336
        %s338 = sld [smem:[#allocation3 + $0x5]]
        %v339 = vstv %s338
        %v340 = vmul.f32 %v280, %v339
        %s341 = sld [smem:[#allocation7 + $0x5]]
        %v342 = vstv %s341
        %v343 = vadd.f32 %v340, %v342
        %v344 = vmax.f32 %v343, 0.0
        %s345 = sld [smem:[#allocation9 + $0x5]]
        %v346 = vstv %s345
        %v347 = vmul.f32 %v344, %v346
        %v348 = vadd.f32 %v337, %v347
        %s349 = sld [smem:[#allocation3 + $0x6]]
        %v350 = vstv %s349
        %v351 = vmul.f32 %v280, %v350
        %s352 = sld [smem:[#allocation7 + $0x6]]
        %v353 = vstv %s352
        %v354 = vadd.f32 %v351, %v353
        %v355 = vmax.f32 %v354, 0.0
        %s356 = sld [smem:[#allocation9 + $0x6]]
        %v357 = vstv %s356
        %v358 = vmul.f32 %v355, %v357
        %v359 = vadd.f32 %v348, %v358
        %s360 = sld [smem:[#allocation3 + $0x7]]
        %v361 = vstv %s360
        %v362 = vmul.f32 %v280, %v361
        %s363 = sld [smem:[#allocation7 + $0x7]]
        %v364 = vstv %s363
        %v365 = vadd.f32 %v362, %v364
        %v366 = vmax.f32 %v365, 0.0
        %s367 = sld [smem:[#allocation9 + $0x7]]
        %v368 = vstv %s367
        %v369 = vmul.f32 %v366, %v368
        %v370 = vadd.f32 %v359, %v369
        %s371 = sld [smem:[#allocation3 + $0x8]]
        %v372 = vstv %s371
        %v373 = vmul.f32 %v280, %v372
        %s374 = sld [smem:[#allocation7 + $0x8]]
        %v375 = vstv %s374
        %v376 = vadd.f32 %v373, %v375
        %v377 = vmax.f32 %v376, 0.0
        %s378 = sld [smem:[#allocation9 + $0x8]]
        %v379 = vstv %s378
        %v380 = vmul.f32 %v377, %v379
        %v381 = vadd.f32 %v370, %v380
        %s382 = sld [smem:[#allocation3 + $0x9]]
        %v383 = vstv %s382
        %v384 = vmul.f32 %v280, %v383
        %s385 = sld [smem:[#allocation7 + $0x9]]
        %v386 = vstv %s385
        %v387 = vadd.f32 %v384, %v386
        %v388 = vmax.f32 %v387, 0.0
        %s389 = sld [smem:[#allocation9 + $0x9]]
        %v390 = vstv %s389
        %v391 = vmul.f32 %v388, %v390
        %v392 = vadd.f32 %v381, %v391
        %s393 = sld [smem:[#allocation3 + $0xa]]
        %v394 = vstv %s393
        %v395 = vmul.f32 %v280, %v394
        %s396 = sld [smem:[#allocation7 + $0xa]]
        %v397 = vstv %s396
        %v398 = vadd.f32 %v395, %v397
        %v399 = vmax.f32 %v398, 0.0
        %s400 = sld [smem:[#allocation9 + $0xa]]
        %v401 = vstv %s400
        %v402 = vmul.f32 %v399, %v401
        %v403 = vadd.f32 %v392, %v402
        %s404 = sld [smem:[#allocation3 + $0xb]]
        %v405 = vstv %s404
        %v406 = vmul.f32 %v280, %v405
        %s407 = sld [smem:[#allocation7 + $0xb]]
        %v408 = vstv %s407
        %v409 = vadd.f32 %v406, %v408
        %v410 = vmax.f32 %v409, 0.0
        %s411 = sld [smem:[#allocation9 + $0xb]]
        %v412 = vstv %s411
        %v413 = vmul.f32 %v410, %v412
        %v414 = vadd.f32 %v403, %v413
        %s415 = sld [smem:[#allocation3 + $0xc]]
        %v416 = vstv %s415
        %v417 = vmul.f32 %v280, %v416
        %s418 = sld [smem:[#allocation7 + $0xc]]
        %v419 = vstv %s418
        %v420 = vadd.f32 %v417, %v419
        %v421 = vmax.f32 %v420, 0.0
        %s422 = sld [smem:[#allocation9 + $0xc]]
        %v423 = vstv %s422
        %v424 = vmul.f32 %v421, %v423
        %v425 = vadd.f32 %v414, %v424
        %s426 = sld [smem:[#allocation3 + $0xd]]
        %v427 = vstv %s426
        %v428 = vmul.f32 %v280, %v427
        %s429 = sld [smem:[#allocation7 + $0xd]]
        %v430 = vstv %s429
        %v431 = vadd.f32 %v428, %v430
        %v432 = vmax.f32 %v431, 0.0
        %s433 = sld [smem:[#allocation9 + $0xd]]
        %v434 = vstv %s433
        %v435 = vmul.f32 %v432, %v434
        %v436 = vadd.f32 %v425, %v435
        %s437 = sld [smem:[#allocation3 + $0xe]]
        %v438 = vstv %s437
        %v439 = vmul.f32 %v280, %v438
        %s440 = sld [smem:[#allocation7 + $0xe]]
        %v441 = vstv %s440
        %v442 = vadd.f32 %v439, %v441
        %v443 = vmax.f32 %v442, 0.0
        %s444 = sld [smem:[#allocation9 + $0xe]]
        %v445 = vstv %s444
        %v446 = vmul.f32 %v443, %v445
        %v447 = vadd.f32 %v436, %v446
        %s448 = sld [smem:[#allocation3 + $0xf]]
        %v449 = vstv %s448
        %v450 = vmul.f32 %v280, %v449
        %s451 = sld [smem:[#allocation7 + $0xf]]
        %v452 = vstv %s451
        %v453 = vadd.f32 %v450, %v452
        %v454 = vmax.f32 %v453, 0.0
        %s455 = sld [smem:[#allocation9 + $0xf]]
        %v456 = vstv %s455
        %v457 = vmul.f32 %v454, %v456
        %v458 = vadd.f32 %v447, %v457
        %s459 = sld [smem:[#allocation3 + $0x10]]
        %v460 = vstv %s459
        %v461 = vmul.f32 %v280, %v460
        %s462 = sld [smem:[#allocation7 + $0x10]]
        %v463 = vstv %s462
        %v464 = vadd.f32 %v461, %v463
        %v465 = vmax.f32 %v464, 0.0
        %s466 = sld [smem:[#allocation9 + $0x10]]
        %v467 = vstv %s466
        %v468 = vmul.f32 %v465, %v467
        %v469 = vadd.f32 %v458, %v468
        %s470 = sld [smem:[#allocation3 + $0x11]]
        %v471 = vstv %s470
        %v472 = vmul.f32 %v280, %v471
        %s473 = sld [smem:[#allocation7 + $0x11]]
        %v474 = vstv %s473
        %v475 = vadd.f32 %v472, %v474
        %v476 = vmax.f32 %v475, 0.0
        %s477 = sld [smem:[#allocation9 + $0x11]]
        %v478 = vstv %s477
        %v479 = vmul.f32 %v476, %v478
        %v480 = vadd.f32 %v469, %v479
        %s481 = sld [smem:[#allocation3 + $0x12]]
        %v482 = vstv %s481
        %v483 = vmul.f32 %v280, %v482
        %s484 = sld [smem:[#allocation7 + $0x12]]
        %v485 = vstv %s484
        %v486 = vadd.f32 %v483, %v485
        %v487 = vmax.f32 %v486, 0.0
        %s488 = sld [smem:[#allocation9 + $0x12]]
        %v489 = vstv %s488
        %v490 = vmul.f32 %v487, %v489
        %v491 = vadd.f32 %v480, %v490
        %s492 = sld [smem:[#allocation3 + $0x13]]
        %v493 = vstv %s492
        %v494 = vmul.f32 %v280, %v493
        %s495 = sld [smem:[#allocation7 + $0x13]]
        %v496 = vstv %s495
        %v497 = vadd.f32 %v494, %v496
        %v498 = vmax.f32 %v497, 0.0
        %s499 = sld [smem:[#allocation9 + $0x13]]
        %v500 = vstv %s499
        %v501 = vmul.f32 %v498, %v500
        %v502 = vadd.f32 %v491, %v501
        %s503 = sld [smem:[#allocation3 + $0x14]]
        %v504 = vstv %s503
        %v505 = vmul.f32 %v280, %v504
        %s506 = sld [smem:[#allocation7 + $0x14]]
        %v507 = vstv %s506
        %v508 = vadd.f32 %v505, %v507
        %v509 = vmax.f32 %v508, 0.0
        %s510 = sld [smem:[#allocation9 + $0x14]]
        %v511 = vstv %s510
        %v512 = vmul.f32 %v509, %v511
        %v513 = vadd.f32 %v502, %v512
        %s514 = sld [smem:[#allocation3 + $0x15]]
        %v515 = vstv %s514
        %v516 = vmul.f32 %v280, %v515
        %s517 = sld [smem:[#allocation7 + $0x15]]
        %v518 = vstv %s517
        %v519 = vadd.f32 %v516, %v518
        %v520 = vmax.f32 %v519, 0.0
        %s521 = sld [smem:[#allocation9 + $0x15]]
        %v522 = vstv %s521
        %v523 = vmul.f32 %v520, %v522
        %v524 = vadd.f32 %v513, %v523
        %s525 = sld [smem:[#allocation3 + $0x16]]
        %v526 = vstv %s525
        %v527 = vmul.f32 %v280, %v526
        %s528 = sld [smem:[#allocation7 + $0x16]]
        %v529 = vstv %s528
        %v530 = vadd.f32 %v527, %v529
        %v531 = vmax.f32 %v530, 0.0
        %s532 = sld [smem:[#allocation9 + $0x16]]
        %v533 = vstv %s532
        %v534 = vmul.f32 %v531, %v533
        %v535 = vadd.f32 %v524, %v534
        %s536 = sld [smem:[#allocation3 + $0x17]]
        %v537 = vstv %s536
        %v538 = vmul.f32 %v280, %v537
        %s539 = sld [smem:[#allocation7 + $0x17]]
        %v540 = vstv %s539
        %v541 = vadd.f32 %v538, %v540
        %v542 = vmax.f32 %v541, 0.0
        %s543 = sld [smem:[#allocation9 + $0x17]]
        %v544 = vstv %s543
        %v545 = vmul.f32 %v542, %v544
        %v546 = vadd.f32 %v535, %v545
        %s547 = sld [smem:[#allocation3 + $0x18]]
        %v548 = vstv %s547
        %v549 = vmul.f32 %v280, %v548
        %s550 = sld [smem:[#allocation7 + $0x18]]
        %v551 = vstv %s550
        %v552 = vadd.f32 %v549, %v551
        %v553 = vmax.f32 %v552, 0.0
        %s554 = sld [smem:[#allocation9 + $0x18]]
        %v555 = vstv %s554
        %v556 = vmul.f32 %v553, %v555
        %v557 = vadd.f32 %v546, %v556
        %s558 = sld [smem:[#allocation3 + $0x19]]
        %v559 = vstv %s558
        %v560 = vmul.f32 %v280, %v559
        %s561 = sld [smem:[#allocation7 + $0x19]]
        %v562 = vstv %s561
        %v563 = vadd.f32 %v560, %v562
        %v564 = vmax.f32 %v563, 0.0
        %s565 = sld [smem:[#allocation9 + $0x19]]
        %v566 = vstv %s565
        %v567 = vmul.f32 %v564, %v566
        %v568 = vadd.f32 %v557, %v567
        %s569 = sld [smem:[#allocation3 + $0x1a]]
        %v570 = vstv %s569
        %v571 = vmul.f32 %v280, %v570
        %s572 = sld [smem:[#allocation7 + $0x1a]]
        %v573 = vstv %s572
        %v574 = vadd.f32 %v571, %v573
        %v575 = vmax.f32 %v574, 0.0
        %s576 = sld [smem:[#allocation9 + $0x1a]]
        %v577 = vstv %s576
        %v578 = vmul.f32 %v575, %v577
        %v579 = vadd.f32 %v568, %v578
        %s580 = sld [smem:[#allocation3 + $0x1b]]
        %v581 = vstv %s580
        %v582 = vmul.f32 %v280, %v581
        %s583 = sld [smem:[#allocation7 + $0x1b]]
        %v584 = vstv %s583
        %v585 = vadd.f32 %v582, %v584
        %v586 = vmax.f32 %v585, 0.0
        %s587 = sld [smem:[#allocation9 + $0x1b]]
        %v588 = vstv %s587
        %v589 = vmul.f32 %v586, %v588
        %v590 = vadd.f32 %v579, %v589
        %s591 = sld [smem:[#allocation3 + $0x1c]]
        %v592 = vstv %s591
        %v593 = vmul.f32 %v280, %v592
        %s594 = sld [smem:[#allocation7 + $0x1c]]
        %v595 = vstv %s594
        %v596 = vadd.f32 %v593, %v595
        %v597 = vmax.f32 %v596, 0.0
        %s598 = sld [smem:[#allocation9 + $0x1c]]
        %v599 = vstv %s598
        %v600 = vmul.f32 %v597, %v599
        %v601 = vadd.f32 %v590, %v600
        %s602 = sld [smem:[#allocation3 + $0x1d]]
        %v603 = vstv %s602
        %v604 = vmul.f32 %v280, %v603
        %s605 = sld [smem:[#allocation7 + $0x1d]]
        %v606 = vstv %s605
        %v607 = vadd.f32 %v604, %v606
        %v608 = vmax.f32 %v607, 0.0
        %s609 = sld [smem:[#allocation9 + $0x1d]]
        %v610 = vstv %s609
        %v611 = vmul.f32 %v608, %v610
        %v612 = vadd.f32 %v601, %v611
        %s613 = sld [smem:[#allocation3 + $0x1e]]
        %v614 = vstv %s613
        %v615 = vmul.f32 %v280, %v614
        %s616 = sld [smem:[#allocation7 + $0x1e]]
        %v617 = vstv %s616
        %v618 = vadd.f32 %v615, %v617
        %v619 = vmax.f32 %v618, 0.0
        %s620 = sld [smem:[#allocation9 + $0x1e]]
        %v621 = vstv %s620
        %v622 = vmul.f32 %v619, %v621
        %v623 = vadd.f32 %v612, %v622
        %s624 = sld [smem:[#allocation3 + $0x1f]]
        %v625 = vstv %s624
        %v626 = vmul.f32 %v280, %v625
        %s627 = sld [smem:[#allocation7 + $0x1f]]
        %v628 = vstv %s627
        %v629 = vadd.f32 %v626, %v628
        %v630 = vmax.f32 %v629, 0.0
        %s631 = sld [smem:[#allocation9 + $0x1f]]
        %v632 = vstv %s631
        %v633 = vmul.f32 %v630, %v632
        %v634 = vadd.f32 %v623, %v633
        %635 = vst [vmem:[%s279] sm:$0xff] %v634
        %s636 = sand.u32 %s143, 1
        %s637 = scalar_lea.sflag [#allocation5], %s636
        %s638 = sand.u32 %s143, 1
        %s639 = smul.addr %s638, 8
        %s640 = scalar_lea.vmem [#allocation11], %s639
        // Predicated region
        $region57: #{tpu_custom_call.1} parent=39 // pred_check
          %p641 = pneg %p153
        $region58: #{tpu_custom_call.1} parent=39 // pred_check_branch
          %643 = sbr.rel (%p641) target = $region60
        $region59: #{tpu_custom_call.1} parent=39 // pred_region
          %s645 = ssub.s32 128, 128
          %646 = vsyncadd %s637, %s645
          %s647 = smul.addr %s25, 128
          %s648 = scalar_lea.hbm %s5, %s647
          %s650 = sshll.u32 %s640, 4
          %s651 = int_to_ptr.vmem [resolvable:$true] %s650
          %653 = dma.vmem_to_hbm [thread:$0]  %s651, 128, %s648, %s637
        $region60: #{tpu_custom_call.1} parent=39 // pred_fallthru
          _
      $region40: #{tpu_custom_call.1} parent=5 // pred_fallthru
        _
      %p654 = scmp.le.s32.totalorder 2, %s20
      // Predicated region
      $region61: #{tpu_custom_call.1} parent=5 // pred_check
        %p655 = pneg %p654
      $region62: #{tpu_custom_call.1} parent=5 // pred_check_branch
        %657 = sbr.rel (%p655) target = $region64
      $region63: #{tpu_custom_call.1} parent=5 // pred_region
        %s658 = ssub.s32 %s20, 2
        // Predicated region
        $region65: #{tpu_custom_call.1} parent=63 // pred_check
          %p659 = pneg %p159
        $region66: #{tpu_custom_call.1} parent=63 // pred_check_branch
          %661 = sbr.rel (%p659) target = $region68
        $region67: #{tpu_custom_call.1} parent=63 // pred_region
          %s662 = sand.u32 %s144, 1
          %s663 = scalar_lea.sflag [#allocation5], %s662
          %s664 = sand.u32 %s144, 1
          %s665 = smul.addr %s664, 8
          %s666 = scalar_lea.vmem [#allocation11], %s665
          %667 = dma.done %s663, 128
        $region68: #{tpu_custom_call.1} parent=63 // pred_fallthru
          _
      $region64: #{tpu_custom_call.1} parent=5 // pred_fallthru
        _
    $region6: #{tpu_custom_call.1} parent=1 // loop_footer
      %s24 = sadd.s32 1, %s20
    $region7: #{tpu_custom_call.1} parent=1 // loop_footer_branch
      %19 = sbr.rel target = $region3
    $region8: #{tpu_custom_call.1} parent=1 // loop_exit
      _
    %668 = vsyncpa [#allocation4], 1
    %s669 = scalar_lea.sflag [#allocation4], 1
    %670 = vsyncpa %s669, 1
    %671 = vsyncpa [#allocation5], 1
    %s672 = scalar_lea.sflag [#allocation5], 1
    %673 = vsyncpa %s672, 1
    %674 = vsyncpa [#allocation6], 1
    %s675 = scalar_lea.sflag [#allocation6], 1
    %676 = vsyncpa %s675, 1
    %677 = vsyncpa [#allocation8], 1

</llo_original>
